<compile_context>
chip_gen: v7x
topology: tpu7x:2x2x1
jax: 0.10.0
libtpu: 0.0.40
codegen_flags: <defaults>
</compile_context>

<pallas_src>
import jax
import jax.numpy as jnp
from jax.experimental import pallas as pl
from jax.experimental.pallas import tpu as pltpu


# ---------------------------------------------------------------------------
# Elementwise helpers used inside the kernel (exp/reciprocal only -> EUP).
# ---------------------------------------------------------------------------
def _erf(x):
    # Abramowitz & Stegun 7.1.26.  Note: pl.reciprocal(approx=True) adds ~1e-4
    # relative error on top of the 1.5e-7 A&S bound -- fine for the bf16-matmul
    # accuracy budget of this model; use approx=False if f32-exact GELU is needed.
    a1, a2, a3, a4, a5 = 0.254829592, -0.284496736, 1.421413741, -1.453152027, 1.061405429
    p = 0.3275911
    sgn = jnp.where(x >= 0.0, 1.0, -1.0)
    ax = jnp.abs(x)
    t = pl.reciprocal(1.0 + p * ax, approx=True)          # EUP slot, off the VALU path
    poly = ((((a5 * t + a4) * t + a3) * t + a2) * t + a1) * t
    return sgn * (1.0 - poly * jnp.exp(-ax * ax))


def _gelu_exact(x):
    # matches torch.nn.GELU() default (erf-based, not tanh approximation)
    return 0.5 * x * (1.0 + _erf(x * 0.7071067811865476))


# ---------------------------------------------------------------------------
# Host-side weight fusion: stack all filters into one (k_max, D, nk*F) tap bank.
# ---------------------------------------------------------------------------
def _fuse_conv_weights(convs, filter_sizes, D, F, k_max):
    nk = len(filter_sizes)
    pad_max = (k_max - 1) // 2
    w = jnp.zeros((k_max, D, nk * F), jnp.float32)
    b = jnp.zeros((1, nk * F), jnp.float32)
    for i, ((wk, bk), k) in enumerate(zip(convs, filter_sizes)):
        pad_k = (k - 1) // 2
        off = pad_max - pad_k                 # tap offset in the stacked (k_max) space
        w = w.at[off:off + k, :, i * F:(i + 1) * F].set(wk)
        b = b.at[:, i * F:(i + 1) * F].set(bk)
    return w, b


# ---------------------------------------------------------------------------
# Tile-size / VMEM-budget helpers (sized against v7x's 64 MiB, the tightest gen).
# ---------------------------------------------------------------------------
def _choose_tb(B, S, H, D, NKF, vmem_target_bytes=24 << 20):
    # dominant live buffers per batch row: input double-buffer + f32 activations
    # + one rolled temp + bf16 matmul operand + conv accumulator
    per_row = S * (2 * H * 4 + D * 4 + D * 4 + D * 2 + NKF * 4) + 256
    tb = max(1, min(B, vmem_target_bytes // per_row))
    if tb >= B and B > 1:                       # prefer grid >= 2 (v7x has 2 TCs)
        tb = max(1, B // 2)
    # respect divisibility + the (8,128) sublane rule on the (TB*S, H) slab
    while tb > 1 and ((tb * S) % 8 != 0 or B % tb != 0):
        tb -= 1
    if tb != B and (tb * S) % 8 != 0:
        tb = B                                  # full-array block is always legal
    return tb


def _vmem_limit_bytes(TB, S, H, D, NKF, C, k_max, itemsize_x):
    R = TB * S
    est = 2 * R * H * itemsize_x                    # input slab, double-buffered
    est += 2 * TB * C * 4                           # output block, double-buffered
    est += 2 * R * D * 4                            # h (f32) + rolled/masked temp
    est += R * D * 2                                # per-tap bf16 operand
    est += R * NKF * 4                              # conv accumulator (f32)
    est += 2 * (H * D + k_max * D * NKF) * 2        # bf16 weights (double-buffered)
    est += 2 * NKF * C * 4                          # f32 head weight
    est += 2 * (D + NKF + C) * 4 * 128              # lane-padded biases
    est *= 2                                        # relayout / pipelining headroom
    return int(max(min(est, 48 << 20), 16 << 20))


# ---------------------------------------------------------------------------
# Fused kernel: one grid step per batch tile.
# ---------------------------------------------------------------------------
def _make_kernel(S, TB, k_max, nkf, compute_dtype):
    pad_max = (k_max - 1) // 2
    R = TB * S                                             # rows per step

    def kernel(x_ref, w_enc_ref, b_enc_ref, w_conv_ref, b_conv_ref,
               w_head_ref, b_head_ref, out_ref):
        # ----- encode: in-kernel bf16 cast + Linear (MXU, f32 acc) + exact GELU ----
        h = jnp.dot(x_ref[...].astype(compute_dtype), w_enc_ref[...],
                    preferred_element_type=jnp.float32)
        h = _gelu_exact(h + b_enc_ref[...])                # (R, D) f32

        # ----- conv: k_max accumulated per-tap matmuls --------------------------
        # column bank t of the conv weight acts on h[row + (t - pad_max)] within each
        # example (zero at sequence boundaries).  Shifts use pltpu.roll (XLU slot);
        # no (R, k_max*D) intermediate and no lane-misaligned concatenate.
        seq = jax.lax.broadcasted_iota(jnp.int32, (R, 1), 0) % S   # grid-invariant, O(R)
        acc = jnp.zeros((R, nkf), jnp.float32)
        for t in range(k_max):
            delta = t - pad_max
            if delta == 0:
                blk = h
            else:
                rolled = pltpu.roll(h, shift=(-delta) % R, axis=0)  # row r <- h[r+delta]
                valid = jnp.logical_and(seq + delta >= 0, seq + delta < S)
                blk = jnp.where(valid, rolled, 0.0)
            acc = acc + jnp.dot(blk.astype(compute_dtype), w_conv_ref[t],
                                preferred_element_type=jnp.float32)
        c = jnp.maximum(acc + b_conv_ref[...], 0.0)        # (R, nk*F) f32

        # ----- per-example sum over the sequence: reshape + XLU reduce -----------
        pooled = jnp.sum(c.reshape(TB, S, nkf), axis=1)    # (TB, nk*F) f32

        # ----- folded proj+pred head (kept f32: tiny GEMM), then log_softmax -----
        logit = jnp.dot(pooled, w_head_ref[...],
                        preferred_element_type=jnp.float32) + b_head_ref[...]   # (TB, C)
        m = jnp.max(logit, axis=-1, keepdims=True)
        lse = jnp.log(jnp.sum(jnp.exp(logit - m), axis=-1, keepdims=True)) + m
        out_ref[0] = logit - lse                           # out block is (1, TB, C)

    return kernel


# ---------------------------------------------------------------------------
# Wrapper: host-side weight folding, BlockSpecs, pallas_call.
# ---------------------------------------------------------------------------
def pretrain_cnn_forward(x, params, filter_sizes, *, compute_dtype=jnp.bfloat16,
                         batch_tile=None):
    B, S, H = x.shape
    D = params["w_enc"].shape[1]
    F = params["convs"][0][0].shape[2]
    nk = len(filter_sizes)
    NKF = nk * F
    C = params["w_pred"].shape[1]
    k_max = max(filter_sizes)

    TB = _choose_tb(B, S, H, D, NKF) if batch_tile is None else int(batch_tile)
    assert B % TB == 0, "batch_tile must divide the batch"
    assert TB == B or (TB * S) % 8 == 0, "(TB*S) must be a multiple of 8 (sublane rule)"
    G = B // TB

    # --- host-side fusion / folding (f32) ------------------------------------
    w_conv, b_conv = _fuse_conv_weights(params["convs"], filter_sizes, D, F, k_max)
    w_head = params["w_proj"] @ params["w_pred"]                           # (nk*F, C)
    b_head = S * (params["b_proj"] @ params["w_pred"]) + params["b_pred"]  # (1, C)

    # x stays in its native dtype; the bf16 cast happens inside the kernel (VPU work
    # hidden under the MXU) instead of as a separate full-HBM-round-trip XLA op.
    x2d = x.reshape(B * S, H)
    w_enc = params["w_enc"].astype(compute_dtype)
    w_conv_c = w_conv.astype(compute_dtype)
    b_enc = params["b_enc"].astype(jnp.float32)
    b_conv = b_conv.astype(jnp.float32)
    w_head = w_head.astype(jnp.float32)          # head kept in f32 (accuracy, tiny GEMM)
    b_head = b_head.astype(jnp.float32)

    kernel = _make_kernel(S=S, TB=TB, k_max=k_max, nkf=NKF, compute_dtype=compute_dtype)

    # Grid-invariant weights: block index never changes across the grid.
    # (pl.Buffered(1) on these specs would reclaim the duplicate buffer; left at the
    #  default here since the weights are tiny relative to the activation slab.)
    def full(a):
        return pl.BlockSpec(a.shape, lambda b, n=a.ndim: (0,) * n)

    flops = 2 * B * S * (H * D + k_max * D * NKF) + 2 * B * NKF * C
    transcendentals = 2 * B * S * D + B * C
    bytes_accessed = (B * S * H * x.dtype.itemsize
                      + (H * D + k_max * D * NKF) * 2
                      + NKF * C * 4 + (D + NKF + C) * 4 + B * C * 4)

    out3 = pl.pallas_call(
        kernel,
        out_shape=jax.ShapeDtypeStruct((G, TB, C), jnp.float32),
        grid=(G,),
        in_specs=[
            pl.BlockSpec((TB * S, H), lambda b: (b, 0)),   # activation slab per batch tile
            full(w_enc), full(b_enc),
            full(w_conv_c), full(b_conv),
            full(w_head), full(b_head),
        ],
        out_specs=pl.BlockSpec((1, TB, C), lambda b: (b, 0, 0)),
        compiler_params=pltpu.CompilerParams(
            dimension_semantics=("parallel",),
            vmem_limit_bytes=_vmem_limit_bytes(TB, S, H, D, NKF, C, k_max,
                                               x.dtype.itemsize)),
        cost_estimate=pl.CostEstimate(flops=int(flops),
                                      transcendentals=int(transcendentals),
                                      bytes_accessed=int(bytes_accessed)),
    )(x2d, w_enc, b_enc, w_conv_c, b_conv, w_head, b_head)

    return out3.reshape(B, C)


# ---------------------------------------------------------------------------
# Pure-JAX references.
# ---------------------------------------------------------------------------
def reference_forward(x, params, filter_sizes):
    """Vanilla f32 reference of the original module math (unfused, per-filter convs)."""
    B, S, H = x.shape
    h = jax.nn.gelu(x @ params["w_enc"] + params["b_enc"], approximate=False)
    feats = []
    for (wk, bk), k in zip(params["convs"], filter_sizes):
        pad_l = (k - 1) // 2
        pad_r = (k - 1) - pad_l
        hp = jnp.pad(h, ((0, 0), (pad_l, pad_r), (0, 0)))
        acc = sum(hp[:, t:t + S, :] @ wk[t] for t in range(k)) + bk
        feats.append(jnp.maximum(acc, 0.0))
    c = jnp.concatenate(feats, axis=-1)
    z = c @ params["w_proj"] + params["b_proj"]
    pooled = z.sum(axis=1)
    logit = pooled @ params["w_pred"] + params["b_pred"]
    return jax.nn.log_softmax(logit, axis=-1)


def reference_forward_fused(x, params, filter_sizes, compute_dtype=jnp.bfloat16):
    """Mirrors the kernel math (per-tap bf16 matmuls, folded f32 head, reshape-sum pool)."""
    B, S, H = x.shape
    D = params["w_enc"].shape[1]
    F = params["convs"][0][0].shape[2]
    k_max = max(filter_sizes)
    pad_max = (k_max - 1) // 2
    w_conv, b_conv = _fuse_conv_weights(params["convs"], filter_sizes, D, F, k_max)
    w_head = params["w_proj"] @ params["w_pred"]
    b_head = S * (params["b_proj"] @ params["w_pred"]) + params["b_pred"]

    R = B * S
    h = jnp.dot(x.reshape(R, H).astype(compute_dtype),
                params["w_enc"].astype(compute_dtype),
                preferred_element_type=jnp.float32) + params["b_enc"]
    h = jax.nn.gelu(h, approximate=False)
    seq = (jnp.arange(R) % S)[:, None]
    acc = jnp.zeros((R, w_conv.shape[-1]), jnp.float32)
    for t in range(k_max):
        delta = t - pad_max
        rolled = jnp.roll(h, -delta, axis=0)
        valid = (seq + delta >= 0) & (seq + delta < S)
        blk = jnp.where(valid, rolled, 0.0).astype(compute_dtype)
        acc = acc + jnp.dot(blk, w_conv[t].astype(compute_dtype),
                            preferred_element_type=jnp.float32)
    c = jnp.maximum(acc + b_conv, 0.0)
    pooled = c.reshape(B, S, -1).sum(axis=1)
    logit = pooled @ w_head + b_head
    return jax.nn.log_softmax(logit, axis=-1)


# ---------------------------------------------------------------------------
if __name__ == "__main__":
    # Small config consistent with the module's __init__:
    #   pretrain hidden_size=32, hid_dim=32, n_filters=8, filter_sizes=(1,3,5),
    #   out_dim=16, class_size=4, single=True, batch=2, seq=8.
    B, S, H = 2, 8, 32
    D, F = 32, 8
    filter_sizes = (1, 3, 5)
    out_dim, C = 16, 4

    key = jax.random.PRNGKey(0)
    ks = jax.random.split(key, 6 + 2 * len(filter_sizes))

    def init(k, shape, scale=0.1):
        return scale * jax.random.normal(k, shape, jnp.float32)

    params = {
        "w_enc": init(ks[0], (H, D)),
        "b_enc": init(ks[1], (1, D)),
        "convs": [(init(ks[2 + 2 * i], (k, D, F)),          # (tap, in_ch, out_ch)
                   init(ks[3 + 2 * i], (1, F)))
                  for i, k in enumerate(filter_sizes)],
        "w_proj": init(ks[2 + 2 * len(filter_sizes)], (len(filter_sizes) * F, out_dim)),
        "b_proj": init(ks[3 + 2 * len(filter_sizes)], (1, out_dim)),
        "w_pred": init(ks[4 + 2 * len(filter_sizes)], (out_dim, C)),
        "b_pred": init(ks[5 + 2 * len(filter_sizes)], (1, C)),
    }

    # Synthetic "last_hidden_state" standing in for the pretrained encoder output.
    x = jax.random.normal(jax.random.fold_in(key, 123), (B, S, H), jnp.float32)

    logits = jax.block_until_ready(pretrain_cnn_forward(x, params, filter_sizes))
    ref_matched = jax.block_until_ready(reference_forward_fused(x, params, filter_sizes))
    ref_f32 = jax.block_until_ready(reference_forward(x, params, filter_sizes))

    assert logits.shape == (B, C)
    # Tight check vs. the bf16-matched reference (same fused math as the kernel).
    assert jnp.allclose(logits, ref_matched, atol=5e-3, rtol=5e-3), (logits, ref_matched)
    # Loose check vs. the vanilla f32 module semantics (bf16-compute tolerance).
    assert jnp.allclose(logits, ref_f32, atol=5e-2, rtol=5e-2), (logits, ref_f32)
    print("KERNEL_OK")
</pallas_src>

<mosaic_0001>
module attributes {stable_mosaic.version = 11 : i64} {
  func.func @kernel(%arg0: i32, %arg1: memref<8x32xf32, #tpu.memory_space<vmem>>, %arg2: memref<32x32xbf16, #tpu.memory_space<vmem>>, %arg3: memref<1x32xf32, #tpu.memory_space<vmem>>, %arg4: memref<5x32x24xbf16, #tpu.memory_space<vmem>>, %arg5: memref<1x24xf32, #tpu.memory_space<vmem>>, %arg6: memref<24x4xf32, #tpu.memory_space<vmem>>, %arg7: memref<1x4xf32, #tpu.memory_space<vmem>>, %arg8: memref<1x1x4xf32, #tpu.memory_space<vmem>>) attributes {dimension_semantics = [#tpu.dimension_semantics<parallel>], iteration_bounds = array<i64: 2>, scalar_prefetch = 0 : i64, scratch_operands = 0 : i64, tpu.core_type = #tpu.core_type<tc>, window_params = [{transform_indices = @transform_0, window_bounds = array<i64: 8, 32>}, {pipeline_mode = #tpu.pipeline_mode<synchronous>, transform_indices = @transform_1, window_bounds = array<i64: 32, 32>}, {pipeline_mode = #tpu.pipeline_mode<synchronous>, transform_indices = @transform_2, window_bounds = array<i64: 1, 32>}, {pipeline_mode = #tpu.pipeline_mode<synchronous>, transform_indices = @transform_3, window_bounds = array<i64: 5, 32, 24>}, {pipeline_mode = #tpu.pipeline_mode<synchronous>, transform_indices = @transform_4, window_bounds = array<i64: 1, 24>}, {pipeline_mode = #tpu.pipeline_mode<synchronous>, transform_indices = @transform_5, window_bounds = array<i64: 24, 4>}, {pipeline_mode = #tpu.pipeline_mode<synchronous>, transform_indices = @transform_6, window_bounds = array<i64: 1, 4>}, {transform_indices = @transform_7, window_bounds = array<i64: 1, 1, 4>}]} {
    %c0 = arith.constant 0 : index
    %c0_0 = arith.constant 0 : index
    %0 = vector.load %arg1[%c0, %c0_0] : memref<8x32xf32, #tpu.memory_space<vmem>>, vector<8x32xf32>
    %1 = arith.truncf %0 : vector<8x32xf32> to vector<8x32xbf16>
    %c0_1 = arith.constant 0 : index
    %c0_2 = arith.constant 0 : index
    %2 = vector.load %arg2[%c0_1, %c0_2] : memref<32x32xbf16, #tpu.memory_space<vmem>>, vector<32x32xbf16>
    %cst = arith.constant dense<0.000000e+00> : vector<8x32xf32>
    %3 = tpu.matmul %1, %2, %cst {dimension_numbers = #tpu.dot_dimension_numbers<[1], [0], [0], [1], [0, 0, 1, 1], [], []>} : vector<8x32xbf16>, vector<32x32xbf16>, vector<8x32xf32> -> vector<8x32xf32>
    %c0_3 = arith.constant 0 : index
    %c0_4 = arith.constant 0 : index
    %4 = vector.load %arg3[%c0_3, %c0_4] : memref<1x32xf32, #tpu.memory_space<vmem>>, vector<1x32xf32>
    %5 = vector.broadcast %4 : vector<1x32xf32> to vector<8x32xf32>
    %6 = arith.addf %3, %5 : vector<8x32xf32>
    %cst_5 = arith.constant 5.000000e-01 : f32
    %7 = vector.broadcast %cst_5 : f32 to vector<8x32xf32>
    %8 = arith.mulf %7, %6 : vector<8x32xf32>
    %cst_6 = arith.constant 0.707106769 : f32
    %9 = vector.broadcast %cst_6 : f32 to vector<8x32xf32>
    %10 = arith.mulf %6, %9 : vector<8x32xf32>
    %cst_7 = arith.constant 0.000000e+00 : f32
    %11 = vector.broadcast %cst_7 : f32 to vector<8x32xf32>
    %12 = arith.cmpf oge, %10, %11 : vector<8x32xf32>
    %cst_8 = arith.constant 1.000000e+00 : f32
    %cst_9 = arith.constant -1.000000e+00 : f32
    %13 = vector.broadcast %cst_8 : f32 to vector<8x32xf32>
    %14 = vector.broadcast %cst_9 : f32 to vector<8x32xf32>
    %15 = arith.select %12, %13, %14 : vector<8x32xi1>, vector<8x32xf32>
    %16 = math.absf %10 : vector<8x32xf32>
    %cst_10 = arith.constant 0.327591091 : f32
    %17 = vector.broadcast %cst_10 : f32 to vector<8x32xf32>
    %18 = arith.mulf %17, %16 : vector<8x32xf32>
    %cst_11 = arith.constant 1.000000e+00 : f32
    %19 = vector.broadcast %cst_11 : f32 to vector<8x32xf32>
    %20 = arith.addf %19, %18 : vector<8x32xf32>
    %21 = tpu.reciprocal %20 {approx = true} : vector<8x32xf32> -> vector<8x32xf32>
    %cst_12 = arith.constant 1.06140542 : f32
    %22 = vector.broadcast %cst_12 : f32 to vector<8x32xf32>
    %23 = arith.mulf %22, %21 : vector<8x32xf32>
    %cst_13 = arith.constant -1.45315206 : f32
    %24 = vector.broadcast %cst_13 : f32 to vector<8x32xf32>
    %25 = arith.addf %23, %24 : vector<8x32xf32>
    %26 = arith.mulf %25, %21 : vector<8x32xf32>
    %cst_14 = arith.constant 1.42141378 : f32
    %27 = vector.broadcast %cst_14 : f32 to vector<8x32xf32>
    %28 = arith.addf %26, %27 : vector<8x32xf32>
    %29 = arith.mulf %28, %21 : vector<8x32xf32>
    %cst_15 = arith.constant -0.284496725 : f32
    %30 = vector.broadcast %cst_15 : f32 to vector<8x32xf32>
    %31 = arith.addf %29, %30 : vector<8x32xf32>
    %32 = arith.mulf %31, %21 : vector<8x32xf32>
    %cst_16 = arith.constant 0.254829586 : f32
    %33 = vector.broadcast %cst_16 : f32 to vector<8x32xf32>
    %34 = arith.addf %32, %33 : vector<8x32xf32>
    %35 = arith.mulf %34, %21 : vector<8x32xf32>
    %cst_17 = arith.constant 0.000000e+00 : f32
    %36 = vector.broadcast %cst_17 : f32 to vector<8x32xf32>
    %37 = arith.subf %36, %16 : vector<8x32xf32>
    %38 = arith.mulf %37, %16 : vector<8x32xf32>
    %39 = math.exp %38 : vector<8x32xf32>
    %40 = arith.mulf %35, %39 : vector<8x32xf32>
    %cst_18 = arith.constant 1.000000e+00 : f32
    %41 = vector.broadcast %cst_18 : f32 to vector<8x32xf32>
    %42 = arith.subf %41, %40 : vector<8x32xf32>
    %43 = arith.mulf %15, %42 : vector<8x32xf32>
    %cst_19 = arith.constant 1.000000e+00 : f32
    %44 = vector.broadcast %cst_19 : f32 to vector<8x32xf32>
    %45 = arith.addf %44, %43 : vector<8x32xf32>
    %46 = arith.mulf %8, %45 : vector<8x32xf32>
    %47 = tpu.iota {dimensions = array<i32: 0>} : vector<8x1xi32>
    %c8_i32 = arith.constant 8 : i32
    %c0_i32 = arith.constant 0 : i32
    %48 = arith.cmpi eq, %c8_i32, %c0_i32 : i32
    %c1_i32 = arith.constant 1 : i32
    %49 = arith.select %48, %c1_i32, %c8_i32 : i32
    %50 = vector.broadcast %49 : i32 to vector<8x1xi32>
    %51 = arith.remsi %47, %50 : vector<8x1xi32>
    %c0_i32_20 = arith.constant 0 : i32
    %52 = vector.broadcast %c0_i32_20 : i32 to vector<8x1xi32>
    %53 = arith.cmpi ne, %51, %52 : vector<8x1xi32>
    %c0_i32_21 = arith.constant 0 : i32
    %54 = vector.broadcast %c0_i32_21 : i32 to vector<8x1xi32>
    %55 = arith.cmpi slt, %51, %54 : vector<8x1xi32>
    %c0_i32_22 = arith.constant 0 : i32
    %56 = arith.cmpi slt, %49, %c0_i32_22 : i32
    %57 = vector.broadcast %56 : i1 to vector<8x1xi1>
    %58 = vector.broadcast %57 : vector<8x1xi1> to vector<8x1xi1>
    %59 = arith.xori %55, %58 : vector<8x1xi1>
    %60 = arith.andi %59, %53 : vector<8x1xi1>
    %61 = vector.broadcast %49 : i32 to vector<8x1xi32>
    %62 = arith.addi %51, %61 : vector<8x1xi32>
    %63 = arith.select %60, %62, %51 : vector<8x1xi1>, vector<8x1xi32>
    %cst_23 = arith.constant 0.000000e+00 : f32
    %64 = vector.broadcast %cst_23 : f32 to vector<8x24xf32>
    %c2_i32 = arith.constant 2 : i32
    %65 = tpu.dynamic_rotate %46 by %c2_i32 dim 0 : vector<8x32xf32>, i32 -> vector<8x32xf32>
    %c-2_i32 = arith.constant -2 : i32
    %66 = vector.broadcast %c-2_i32 : i32 to vector<8x1xi32>
    %67 = arith.addi %63, %66 : vector<8x1xi32>
    %c0_i32_24 = arith.constant 0 : i32
    %68 = vector.broadcast %c0_i32_24 : i32 to vector<8x1xi32>
    %69 = arith.cmpi sge, %67, %68 : vector<8x1xi32>
    %c-2_i32_25 = arith.constant -2 : i32
    %70 = vector.broadcast %c-2_i32_25 : i32 to vector<8x1xi32>
    %71 = arith.addi %63, %70 : vector<8x1xi32>
    %c8_i32_26 = arith.constant 8 : i32
    %72 = vector.broadcast %c8_i32_26 : i32 to vector<8x1xi32>
    %73 = arith.cmpi slt, %71, %72 : vector<8x1xi32>
    %74 = arith.andi %69, %73 : vector<8x1xi1>
    %cst_27 = arith.constant 0.000000e+00 : f32
    %75 = vector.shape_cast %74 : vector<8x1xi1> to vector<8x1xi1>
    %76 = vector.broadcast %75 : vector<8x1xi1> to vector<8x32xi1>
    %77 = vector.broadcast %cst_27 : f32 to vector<8x32xf32>
    %78 = arith.select %76, %65, %77 : vector<8x32xi1>, vector<8x32xf32>
    %79 = arith.truncf %78 : vector<8x32xf32> to vector<8x32xbf16>
    %c0_28 = arith.constant 0 : index
    %c0_29 = arith.constant 0 : index
    %c0_30 = arith.constant 0 : index
    %80 = vector.load %arg4[%c0_28, %c0_29, %c0_30] : memref<5x32x24xbf16, #tpu.memory_space<vmem>>, vector<1x32x24xbf16>
    %81 = vector.shape_cast %80 : vector<1x32x24xbf16> to vector<32x24xbf16>
    %cst_31 = arith.constant dense<0.000000e+00> : vector<8x24xf32>
    %82 = tpu.matmul %79, %81, %cst_31 {dimension_numbers = #tpu.dot_dimension_numbers<[1], [0], [0], [1], [0, 0, 1, 1], [], []>} : vector<8x32xbf16>, vector<32x24xbf16>, vector<8x24xf32> -> vector<8x24xf32>
    %83 = arith.addf %64, %82 : vector<8x24xf32>
    %c1_i32_32 = arith.constant 1 : i32
    %84 = tpu.dynamic_rotate %46 by %c1_i32_32 dim 0 : vector<8x32xf32>, i32 -> vector<8x32xf32>
    %c-1_i32 = arith.constant -1 : i32
    %85 = vector.broadcast %c-1_i32 : i32 to vector<8x1xi32>
    %86 = arith.addi %63, %85 : vector<8x1xi32>
    %c0_i32_33 = arith.constant 0 : i32
    %87 = vector.broadcast %c0_i32_33 : i32 to vector<8x1xi32>
    %88 = arith.cmpi sge, %86, %87 : vector<8x1xi32>
    %c-1_i32_34 = arith.constant -1 : i32
    %89 = vector.broadcast %c-1_i32_34 : i32 to vector<8x1xi32>
    %90 = arith.addi %63, %89 : vector<8x1xi32>
    %c8_i32_35 = arith.constant 8 : i32
    %91 = vector.broadcast %c8_i32_35 : i32 to vector<8x1xi32>
    %92 = arith.cmpi slt, %90, %91 : vector<8x1xi32>
    %93 = arith.andi %88, %92 : vector<8x1xi1>
    %cst_36 = arith.constant 0.000000e+00 : f32
    %94 = vector.shape_cast %93 : vector<8x1xi1> to vector<8x1xi1>
    %95 = vector.broadcast %94 : vector<8x1xi1> to vector<8x32xi1>
    %96 = vector.broadcast %cst_36 : f32 to vector<8x32xf32>
    %97 = arith.select %95, %84, %96 : vector<8x32xi1>, vector<8x32xf32>
    %98 = arith.truncf %97 : vector<8x32xf32> to vector<8x32xbf16>
    %c1 = arith.constant 1 : index
    %c0_37 = arith.constant 0 : index
    %c0_38 = arith.constant 0 : index
    %99 = vector.load %arg4[%c1, %c0_37, %c0_38] : memref<5x32x24xbf16, #tpu.memory_space<vmem>>, vector<1x32x24xbf16>
    %100 = vector.shape_cast %99 : vector<1x32x24xbf16> to vector<32x24xbf16>
    %cst_39 = arith.constant dense<0.000000e+00> : vector<8x24xf32>
    %101 = tpu.matmul %98, %100, %cst_39 {dimension_numbers = #tpu.dot_dimension_numbers<[1], [0], [0], [1], [0, 0, 1, 1], [], []>} : vector<8x32xbf16>, vector<32x24xbf16>, vector<8x24xf32> -> vector<8x24xf32>
    %102 = arith.addf %83, %101 : vector<8x24xf32>
    %103 = arith.truncf %46 : vector<8x32xf32> to vector<8x32xbf16>
    %c2 = arith.constant 2 : index
    %c0_40 = arith.constant 0 : index
    %c0_41 = arith.constant 0 : index
    %104 = vector.load %arg4[%c2, %c0_40, %c0_41] : memref<5x32x24xbf16, #tpu.memory_space<vmem>>, vector<1x32x24xbf16>
    %105 = vector.shape_cast %104 : vector<1x32x24xbf16> to vector<32x24xbf16>
    %cst_42 = arith.constant dense<0.000000e+00> : vector<8x24xf32>
    %106 = tpu.matmul %103, %105, %cst_42 {dimension_numbers = #tpu.dot_dimension_numbers<[1], [0], [0], [1], [0, 0, 1, 1], [], []>} : vector<8x32xbf16>, vector<32x24xbf16>, vector<8x24xf32> -> vector<8x24xf32>
    %107 = arith.addf %102, %106 : vector<8x24xf32>
    %c7_i32 = arith.constant 7 : i32
    %108 = tpu.dynamic_rotate %46 by %c7_i32 dim 0 : vector<8x32xf32>, i32 -> vector<8x32xf32>
    %c1_i32_43 = arith.constant 1 : i32
    %109 = vector.broadcast %c1_i32_43 : i32 to vector<8x1xi32>
    %110 = arith.addi %63, %109 : vector<8x1xi32>
    %c0_i32_44 = arith.constant 0 : i32
    %111 = vector.broadcast %c0_i32_44 : i32 to vector<8x1xi32>
    %112 = arith.cmpi sge, %110, %111 : vector<8x1xi32>
    %c1_i32_45 = arith.constant 1 : i32
    %113 = vector.broadcast %c1_i32_45 : i32 to vector<8x1xi32>
    %114 = arith.addi %63, %113 : vector<8x1xi32>
    %c8_i32_46 = arith.constant 8 : i32
    %115 = vector.broadcast %c8_i32_46 : i32 to vector<8x1xi32>
    %116 = arith.cmpi slt, %114, %115 : vector<8x1xi32>
    %117 = arith.andi %112, %116 : vector<8x1xi1>
    %cst_47 = arith.constant 0.000000e+00 : f32
    %118 = vector.shape_cast %117 : vector<8x1xi1> to vector<8x1xi1>
    %119 = vector.broadcast %118 : vector<8x1xi1> to vector<8x32xi1>
    %120 = vector.broadcast %cst_47 : f32 to vector<8x32xf32>
    %121 = arith.select %119, %108, %120 : vector<8x32xi1>, vector<8x32xf32>
    %122 = arith.truncf %121 : vector<8x32xf32> to vector<8x32xbf16>
    %c3 = arith.constant 3 : index
    %c0_48 = arith.constant 0 : index
    %c0_49 = arith.constant 0 : index
    %123 = vector.load %arg4[%c3, %c0_48, %c0_49] : memref<5x32x24xbf16, #tpu.memory_space<vmem>>, vector<1x32x24xbf16>
    %124 = vector.shape_cast %123 : vector<1x32x24xbf16> to vector<32x24xbf16>
    %cst_50 = arith.constant dense<0.000000e+00> : vector<8x24xf32>
    %125 = tpu.matmul %122, %124, %cst_50 {dimension_numbers = #tpu.dot_dimension_numbers<[1], [0], [0], [1], [0, 0, 1, 1], [], []>} : vector<8x32xbf16>, vector<32x24xbf16>, vector<8x24xf32> -> vector<8x24xf32>
    %126 = arith.addf %107, %125 : vector<8x24xf32>
    %c6_i32 = arith.constant 6 : i32
    %127 = tpu.dynamic_rotate %46 by %c6_i32 dim 0 : vector<8x32xf32>, i32 -> vector<8x32xf32>
    %c2_i32_51 = arith.constant 2 : i32
    %128 = vector.broadcast %c2_i32_51 : i32 to vector<8x1xi32>
    %129 = arith.addi %63, %128 : vector<8x1xi32>
    %c0_i32_52 = arith.constant 0 : i32
    %130 = vector.broadcast %c0_i32_52 : i32 to vector<8x1xi32>
    %131 = arith.cmpi sge, %129, %130 : vector<8x1xi32>
    %c2_i32_53 = arith.constant 2 : i32
    %132 = vector.broadcast %c2_i32_53 : i32 to vector<8x1xi32>
    %133 = arith.addi %63, %132 : vector<8x1xi32>
    %c8_i32_54 = arith.constant 8 : i32
    %134 = vector.broadcast %c8_i32_54 : i32 to vector<8x1xi32>
    %135 = arith.cmpi slt, %133, %134 : vector<8x1xi32>
    %136 = arith.andi %131, %135 : vector<8x1xi1>
    %cst_55 = arith.constant 0.000000e+00 : f32
    %137 = vector.shape_cast %136 : vector<8x1xi1> to vector<8x1xi1>
    %138 = vector.broadcast %137 : vector<8x1xi1> to vector<8x32xi1>
    %139 = vector.broadcast %cst_55 : f32 to vector<8x32xf32>
    %140 = arith.select %138, %127, %139 : vector<8x32xi1>, vector<8x32xf32>
    %141 = arith.truncf %140 : vector<8x32xf32> to vector<8x32xbf16>
    %c4 = arith.constant 4 : index
    %c0_56 = arith.constant 0 : index
    %c0_57 = arith.constant 0 : index
    %142 = vector.load %arg4[%c4, %c0_56, %c0_57] : memref<5x32x24xbf16, #tpu.memory_space<vmem>>, vector<1x32x24xbf16>
    %143 = vector.shape_cast %142 : vector<1x32x24xbf16> to vector<32x24xbf16>
    %cst_58 = arith.constant dense<0.000000e+00> : vector<8x24xf32>
    %144 = tpu.matmul %141, %143, %cst_58 {dimension_numbers = #tpu.dot_dimension_numbers<[1], [0], [0], [1], [0, 0, 1, 1], [], []>} : vector<8x32xbf16>, vector<32x24xbf16>, vector<8x24xf32> -> vector<8x24xf32>
    %145 = arith.addf %126, %144 : vector<8x24xf32>
    %c0_59 = arith.constant 0 : index
    %c0_60 = arith.constant 0 : index
    %146 = vector.load %arg5[%c0_59, %c0_60] : memref<1x24xf32, #tpu.memory_space<vmem>>, vector<1x24xf32>
    %147 = vector.broadcast %146 : vector<1x24xf32> to vector<8x24xf32>
    %148 = arith.addf %145, %147 : vector<8x24xf32>
    %cst_61 = arith.constant 0.000000e+00 : f32
    %149 = vector.broadcast %cst_61 : f32 to vector<8x24xf32>
    %150 = arith.maximumf %148, %149 : vector<8x24xf32>
    %151 = vector.shape_cast %150 : vector<8x24xf32> to vector<1x8x24xf32>
    %cst_62 = arith.constant dense<0.000000e+00> : vector<1x24xf32>
    %152 = vector.multi_reduction <add>, %151, %cst_62 [1] : vector<1x8x24xf32> to vector<1x24xf32>
    %c0_63 = arith.constant 0 : index
    %c0_64 = arith.constant 0 : index
    %153 = vector.load %arg6[%c0_63, %c0_64] : memref<24x4xf32, #tpu.memory_space<vmem>>, vector<24x4xf32>
    %cst_65 = arith.constant dense<0.000000e+00> : vector<1x4xf32>
    %154 = tpu.matmul %152, %153, %cst_65 {dimension_numbers = #tpu.dot_dimension_numbers<[1], [0], [0], [1], [0, 0, 1, 1], [], []>} : vector<1x24xf32>, vector<24x4xf32>, vector<1x4xf32> -> vector<1x4xf32>
    %c0_66 = arith.constant 0 : index
    %c0_67 = arith.constant 0 : index
    %155 = vector.load %arg7[%c0_66, %c0_67] : memref<1x4xf32, #tpu.memory_space<vmem>>, vector<1x4xf32>
    %156 = arith.addf %154, %155 : vector<1x4xf32>
    %cst_68 = arith.constant dense<0xFF800000> : vector<1xf32>
    %157 = vector.multi_reduction <maximumf>, %156, %cst_68 [1] : vector<1x4xf32> to vector<1xf32>
    %158 = vector.shape_cast %157 : vector<1xf32> to vector<1x1xf32>
    %159 = vector.broadcast %158 : vector<1x1xf32> to vector<1x4xf32>
    %160 = arith.subf %156, %159 : vector<1x4xf32>
    %161 = math.exp %160 : vector<1x4xf32>
    %cst_69 = arith.constant dense<0.000000e+00> : vector<1xf32>
    %162 = vector.multi_reduction <add>, %161, %cst_69 [1] : vector<1x4xf32> to vector<1xf32>
    %163 = vector.shape_cast %162 : vector<1xf32> to vector<1x1xf32>
    %164 = math.log %163 : vector<1x1xf32>
    %165 = arith.addf %164, %158 : vector<1x1xf32>
    %166 = vector.broadcast %165 : vector<1x1xf32> to vector<1x4xf32>
    %167 = arith.subf %156, %166 : vector<1x4xf32>
    %c0_70 = arith.constant 0 : index
    %c0_71 = arith.constant 0 : index
    %c0_72 = arith.constant 0 : index
    %168 = vector.load %arg8[%c0_70, %c0_71, %c0_72] : memref<1x1x4xf32, #tpu.memory_space<vmem>>, vector<1x1x4xf32>
    %169 = vector.shape_cast %168 : vector<1x1x4xf32> to vector<1x4xf32>
    %170 = vector.shape_cast %167 : vector<1x4xf32> to vector<1x1x4xf32>
    tpu.vector_store %arg8[%c0_70, %c0_71, %c0_72], %170 {strides = array<i32>} : memref<1x1x4xf32, #tpu.memory_space<vmem>>, vector<1x1x4xf32>,
    return
  }
  func.func @transform_0(%arg0: i32) -> (i32, i32) {
    %c0_i32 = arith.constant 0 : i32
    %c0_i32_0 = arith.constant 0 : i32
    return %arg0, %c0_i32 : i32, i32
  }
  func.func @transform_1(%arg0: i32) -> (i32, i32) {
    %c0_i32 = arith.constant 0 : i32
    %c0_i32_0 = arith.constant 0 : i32
    %c0_i32_1 = arith.constant 0 : i32
    return %c0_i32, %c0_i32_0 : i32, i32
  }
  func.func @transform_2(%arg0: i32) -> (i32, i32) {
    %c0_i32 = arith.constant 0 : i32
    %c0_i32_0 = arith.constant 0 : i32
    %c0_i32_1 = arith.constant 0 : i32
    return %c0_i32, %c0_i32_0 : i32, i32
  }
  func.func @transform_3(%arg0: i32) -> (i32, i32, i32) {
    %c0_i32 = arith.constant 0 : i32
    %c0_i32_0 = arith.constant 0 : i32
    %c0_i32_1 = arith.constant 0 : i32
    %c0_i32_2 = arith.constant 0 : i32
    return %c0_i32, %c0_i32_0, %c0_i32_1 : i32, i32, i32
  }
  func.func @transform_4(%arg0: i32) -> (i32, i32) {
    %c0_i32 = arith.constant 0 : i32
    %c0_i32_0 = arith.constant 0 : i32
    %c0_i32_1 = arith.constant 0 : i32
    return %c0_i32, %c0_i32_0 : i32, i32
  }
  func.func @transform_5(%arg0: i32) -> (i32, i32) {
    %c0_i32 = arith.constant 0 : i32
    %c0_i32_0 = arith.constant 0 : i32
    %c0_i32_1 = arith.constant 0 : i32
    return %c0_i32, %c0_i32_0 : i32, i32
  }
  func.func @transform_6(%arg0: i32) -> (i32, i32) {
    %c0_i32 = arith.constant 0 : i32
    %c0_i32_0 = arith.constant 0 : i32
    %c0_i32_1 = arith.constant 0 : i32
    return %c0_i32, %c0_i32_0 : i32, i32
  }
  func.func @transform_7(%arg0: i32) -> (i32, i32, i32) {
    %c0_i32 = arith.constant 0 : i32
    %c0_i32_0 = arith.constant 0 : i32
    %c0_i32_1 = arith.constant 0 : i32
    return %arg0, %c0_i32, %c0_i32_0 : i32, i32, i32
  }
}

</mosaic_0001>

<llo_original>
// kernel: tpu_custom_call.1
$region0: #{tpu_custom_call.1}
  #allocation0 [shape = 'u32[]', space=smem, size = 0x4, offset = 0x4, fixed_abs, tag = 'smem constant byte address 0x4 - core index']
  #allocation1 [shape = 'u32[144,128]{1,0:T(1,128)}', space=vmem, size = 0x12000, scoped, tag = 'internal scratch']
  %s0 = inlined_call_operand.vmem [shape: f32[16,32], index: 0, kind: input, shape index: {}]
  %s1 = inlined_call_operand.vmem [shape: bf16[32,32], index: 1, kind: input, shape index: {}]
  %s2 = inlined_call_operand.vmem [shape: f32[1,32], index: 2, kind: input, shape index: {}]
  %s3 = inlined_call_operand.vmem [shape: bf16[5,32,24], index: 3, kind: input, shape index: {}]
  %s4 = inlined_call_operand.vmem [shape: f32[1,24], index: 4, kind: input, shape index: {}]
  %s5 = inlined_call_operand.vmem [shape: f32[24,4], index: 5, kind: input, shape index: {}]
  %s6 = inlined_call_operand.vmem [shape: f32[1,4], index: 6, kind: input, shape index: {}]
  %s7 = inlined_call_operand.hbm [shape: f32[2,1,4], index: 7, kind: output, shape index: {}]
  %s8 = sld [smem:[#allocation0]]
  $region61: #{tpu_custom_call.1} parent=0
    _
  %s10 = ssub.s32 1, %s8
  %s11 = scalar_select 0, %s10, %s8
  $region1: #{tpu_custom_call.1} parent=0
    #allocation2 [shape = 'u8[1024]{0}', space=vmem, size = 0x400, scoped, tag = 'output window, operand 0']
    #allocation3 [shape = 's32[2]{0}', space=sflag, size = 0x8, scoped, tag = 'scoped memory for tpu_custom_call.1']
    %12 = vsyncpa [#allocation3], 0
    %s13 = scalar_lea.sflag [#allocation3], 1
    %14 = vsyncpa %s13, 0
    loop: start=0, step=1, limit=4
    $region2: #{tpu_custom_call.1} parent=1 // loop_pre_header
      _
    $region3: #{tpu_custom_call.1} parent=1 // loop_header
      %s16 = sphi 0, %s20
      %p17 = scmp.ge.s32.totalorder %s16, 4
      %s26 = sphi 0, %s28
      %s29 = sphi 0, %s26
      %s30 = sphi 0, %s29
      %s46 = sphi 0, %s30
      %s50 = sphi 0, %s50
      %s52 = sphi 0, %s50
      %s53 = sphi 0, %s52
      %s67 = sphi 0, %s53
      %s71 = sphi 0, %s71
      %s73 = sphi 0, %s71
      %s74 = sphi 0, %s73
      %s88 = sphi 0, %s74
      %s92 = sphi 0, %s92
      %s94 = sphi 0, %s92
      %s95 = sphi 0, %s94
      %s109 = sphi 0, %s95
      %s113 = sphi 0, %s113
      %s115 = sphi 0, %s113
      %s116 = sphi 0, %s115
      %s130 = sphi 0, %s116
      %s134 = sphi 0, %s134
      %s136 = sphi 0, %s134
      %s137 = sphi 0, %s136
      %s151 = sphi 0, %s137
      %s155 = sphi 0, %s155
      %s157 = sphi 0, %s155
      %s158 = sphi 0, %s157
      %s172 = sphi 0, %s158
      %s178 = sphi 0, %s180
      %s181 = sphi 0, %s178
      %s182 = sphi 0, %s181
      %s198 = sphi 0, %s182
    $region4: #{tpu_custom_call.1} parent=1 // loop_header_branch
      %19 = sbr.rel (%p17) target = $region8
    $region5: #{tpu_custom_call.1} parent=1 // loop_body
      %s21 = ssub.s32 %s16, 1
      %s22 = ssub.s32 %s16, 2
      %s23 = sadd.s32 %s16, 1
      %s24 = ssub.s32 %s16, %s23
      %p25 = scmp.eq.s32.totalorder %s24, 0
      %s27 = sadd.s32 %s26, 1
      %s28 = scalar_select %p25, %s26, %s27
      %p31 = pneg %p25
      %p32 = scmp.eq.s32.totalorder %s16, 1
      %p33 = por %p31, %p32
      %p34 = scmp.ne.s32.totalorder %s26, %s29
      %p35 = scmp.eq.s32.totalorder %s16, 0
      %p36 = por %p34, %p35
      %p37 = scmp.ne.s32.totalorder %s26, %s29
      %p38 = scmp.eq.s32.totalorder %s21, 1
      %p39 = por %p37, %p38
      %p40 = scmp.ne.s32.totalorder %s29, %s30
      %p41 = scmp.eq.s32.totalorder %s21, 0
      %p42 = por %p40, %p41
      %p43 = scmp.ne.s32.totalorder %s29, %s30
      %p44 = scmp.eq.s32.totalorder %s22, 1
      %p45 = por %p43, %p44
      %p47 = scmp.ne.s32.totalorder %s30, %s46
      %p48 = scmp.eq.s32.totalorder %s22, 0
      %p49 = por %p47, %p48
      %s51 = sadd.s32 %s50, 1
      %p54 = scmp.eq.s32.totalorder %s16, 1
      %p55 = scmp.ne.s32.totalorder %s50, %s52
      %p56 = scmp.eq.s32.totalorder %s16, 0
      %p57 = por %p55, %p56
      %p58 = scmp.ne.s32.totalorder %s50, %s52
      %p59 = scmp.eq.s32.totalorder %s21, 1
      %p60 = por %p58, %p59
      %p61 = scmp.ne.s32.totalorder %s52, %s53
      %p62 = scmp.eq.s32.totalorder %s21, 0
      %p63 = por %p61, %p62
      %p64 = scmp.ne.s32.totalorder %s52, %s53
      %p65 = scmp.eq.s32.totalorder %s22, 1
      %p66 = por %p64, %p65
      %p68 = scmp.ne.s32.totalorder %s53, %s67
      %p69 = scmp.eq.s32.totalorder %s22, 0
      %p70 = por %p68, %p69
      %s72 = sadd.s32 %s71, 1
      %p75 = scmp.eq.s32.totalorder %s16, 1
      %p76 = scmp.ne.s32.totalorder %s71, %s73
      %p77 = scmp.eq.s32.totalorder %s16, 0
      %p78 = por %p76, %p77
      %p79 = scmp.ne.s32.totalorder %s71, %s73
      %p80 = scmp.eq.s32.totalorder %s21, 1
      %p81 = por %p79, %p80
      %p82 = scmp.ne.s32.totalorder %s73, %s74
      %p83 = scmp.eq.s32.totalorder %s21, 0
      %p84 = por %p82, %p83
      %p85 = scmp.ne.s32.totalorder %s73, %s74
      %p86 = scmp.eq.s32.totalorder %s22, 1
      %p87 = por %p85, %p86
      %p89 = scmp.ne.s32.totalorder %s74, %s88
      %p90 = scmp.eq.s32.totalorder %s22, 0
      %p91 = por %p89, %p90
      %s93 = sadd.s32 %s92, 1
      %p96 = scmp.eq.s32.totalorder %s16, 1
      %p97 = scmp.ne.s32.totalorder %s92, %s94
      %p98 = scmp.eq.s32.totalorder %s16, 0
      %p99 = por %p97, %p98
      %p100 = scmp.ne.s32.totalorder %s92, %s94
      %p101 = scmp.eq.s32.totalorder %s21, 1
      %p102 = por %p100, %p101
      %p103 = scmp.ne.s32.totalorder %s94, %s95
      %p104 = scmp.eq.s32.totalorder %s21, 0
      %p105 = por %p103, %p104
      %p106 = scmp.ne.s32.totalorder %s94, %s95
      %p107 = scmp.eq.s32.totalorder %s22, 1
      %p108 = por %p106, %p107
      %p110 = scmp.ne.s32.totalorder %s95, %s109
      %p111 = scmp.eq.s32.totalorder %s22, 0
      %p112 = por %p110, %p111
      %s114 = sadd.s32 %s113, 1
      %p117 = scmp.eq.s32.totalorder %s16, 1
      %p118 = scmp.ne.s32.totalorder %s113, %s115
      %p119 = scmp.eq.s32.totalorder %s16, 0
      %p120 = por %p118, %p119
      %p121 = scmp.ne.s32.totalorder %s113, %s115
      %p122 = scmp.eq.s32.totalorder %s21, 1
      %p123 = por %p121, %p122
      %p124 = scmp.ne.s32.totalorder %s115, %s116
      %p125 = scmp.eq.s32.totalorder %s21, 0
      %p126 = por %p124, %p125
      %p127 = scmp.ne.s32.totalorder %s115, %s116
      %p128 = scmp.eq.s32.totalorder %s22, 1
      %p129 = por %p127, %p128
      %p131 = scmp.ne.s32.totalorder %s116, %s130
      %p132 = scmp.eq.s32.totalorder %s22, 0
      %p133 = por %p131, %p132
      %s135 = sadd.s32 %s134, 1
      %p138 = scmp.eq.s32.totalorder %s16, 1
      %p139 = scmp.ne.s32.totalorder %s134, %s136
      %p140 = scmp.eq.s32.totalorder %s16, 0
      %p141 = por %p139, %p140
      %p142 = scmp.ne.s32.totalorder %s134, %s136
      %p143 = scmp.eq.s32.totalorder %s21, 1
      %p144 = por %p142, %p143
      %p145 = scmp.ne.s32.totalorder %s136, %s137
      %p146 = scmp.eq.s32.totalorder %s21, 0
      %p147 = por %p145, %p146
      %p148 = scmp.ne.s32.totalorder %s136, %s137
      %p149 = scmp.eq.s32.totalorder %s22, 1
      %p150 = por %p148, %p149
      %p152 = scmp.ne.s32.totalorder %s137, %s151
      %p153 = scmp.eq.s32.totalorder %s22, 0
      %p154 = por %p152, %p153
      %s156 = sadd.s32 %s155, 1
      %p159 = scmp.eq.s32.totalorder %s16, 1
      %p160 = scmp.ne.s32.totalorder %s155, %s157
      %p161 = scmp.eq.s32.totalorder %s16, 0
      %p162 = por %p160, %p161
      %p163 = scmp.ne.s32.totalorder %s155, %s157
      %p164 = scmp.eq.s32.totalorder %s21, 1
      %p165 = por %p163, %p164
      %p166 = scmp.ne.s32.totalorder %s157, %s158
      %p167 = scmp.eq.s32.totalorder %s21, 0
      %p168 = por %p166, %p167
      %p169 = scmp.ne.s32.totalorder %s157, %s158
      %p170 = scmp.eq.s32.totalorder %s22, 1
      %p171 = por %p169, %p170
      %p173 = scmp.ne.s32.totalorder %s158, %s172
      %p174 = scmp.eq.s32.totalorder %s22, 0
      %p175 = por %p173, %p174
      %s176 = ssub.s32 %s16, %s23
      %p177 = scmp.eq.s32.totalorder %s176, 0
      %s179 = sadd.s32 %s178, 1
      %s180 = scalar_select %p177, %s178, %s179
      %p183 = pneg %p177
      %p184 = scmp.eq.s32.totalorder %s16, 1
      %p185 = por %p183, %p184
      %p186 = scmp.ne.s32.totalorder %s178, %s181
      %p187 = scmp.eq.s32.totalorder %s16, 0
      %p188 = por %p186, %p187
      %p189 = scmp.ne.s32.totalorder %s178, %s181
      %p190 = scmp.eq.s32.totalorder %s21, 1
      %p191 = por %p189, %p190
      %p192 = scmp.ne.s32.totalorder %s181, %s182
      %p193 = scmp.eq.s32.totalorder %s21, 0
      %p194 = por %p192, %p193
      %p195 = scmp.ne.s32.totalorder %s181, %s182
      %p196 = scmp.eq.s32.totalorder %s22, 1
      %p197 = por %p195, %p196
      %p199 = scmp.ne.s32.totalorder %s182, %s198
      %p200 = scmp.eq.s32.totalorder %s22, 0
      %p201 = por %p199, %p200
      %p202 = scmp.le.s32.totalorder 1, %s16
      %p203 = scmp.lt.s32.totalorder %s16, 3
      %p204 = pnand %p202, %p203
      %p205 = pneg %p204
      // Predicated region
      $region9: #{tpu_custom_call.1} parent=5 // pred_check
        _
      $region10: #{tpu_custom_call.1} parent=5 // pred_check_branch
        %207 = sbr.rel (%p204) target = $region12
      $region11: #{tpu_custom_call.1} parent=5 // pred_region
        %s208 = ssub.s32 %s16, 1
        // Predicated region
        $region13: #{tpu_custom_call.1} parent=11 // pred_check
          %p209 = pneg %p63
        $region14: #{tpu_custom_call.1} parent=11 // pred_check_branch
          %211 = sbr.rel (%p209) target = $region16
        $region15: #{tpu_custom_call.1} parent=11 // pred_region
          _
        $region16: #{tpu_custom_call.1} parent=11 // pred_fallthru
          _
        // Predicated region
        $region17: #{tpu_custom_call.1} parent=11 // pred_check
          %p212 = pneg %p84
        $region18: #{tpu_custom_call.1} parent=11 // pred_check_branch
          %214 = sbr.rel (%p212) target = $region20
        $region19: #{tpu_custom_call.1} parent=11 // pred_region
          _
        $region20: #{tpu_custom_call.1} parent=11 // pred_fallthru
          _
        // Predicated region
        $region21: #{tpu_custom_call.1} parent=11 // pred_check
          %p215 = pneg %p105
        $region22: #{tpu_custom_call.1} parent=11 // pred_check_branch
          %217 = sbr.rel (%p215) target = $region24
        $region23: #{tpu_custom_call.1} parent=11 // pred_region
          _
        $region24: #{tpu_custom_call.1} parent=11 // pred_fallthru
          _
        // Predicated region
        $region25: #{tpu_custom_call.1} parent=11 // pred_check
          %p218 = pneg %p126
        $region26: #{tpu_custom_call.1} parent=11 // pred_check_branch
          %220 = sbr.rel (%p218) target = $region28
        $region27: #{tpu_custom_call.1} parent=11 // pred_region
          _
        $region28: #{tpu_custom_call.1} parent=11 // pred_fallthru
          _
        // Predicated region
        $region29: #{tpu_custom_call.1} parent=11 // pred_check
          %p221 = pneg %p147
        $region30: #{tpu_custom_call.1} parent=11 // pred_check_branch
          %223 = sbr.rel (%p221) target = $region32
        $region31: #{tpu_custom_call.1} parent=11 // pred_region
          _
        $region32: #{tpu_custom_call.1} parent=11 // pred_fallthru
          _
        // Predicated region
        $region33: #{tpu_custom_call.1} parent=11 // pred_check
          %p224 = pneg %p168
        $region34: #{tpu_custom_call.1} parent=11 // pred_check_branch
          %226 = sbr.rel (%p224) target = $region36
        $region35: #{tpu_custom_call.1} parent=11 // pred_region
          _
        $region36: #{tpu_custom_call.1} parent=11 // pred_fallthru
          _
      $region12: #{tpu_custom_call.1} parent=5 // pred_fallthru
        _
      %p227 = scmp.lt.s32.totalorder %s16, 2
      // Predicated region
      $region37: #{tpu_custom_call.1} parent=5 // pred_check
        %p228 = pneg %p227
      $region38: #{tpu_custom_call.1} parent=5 // pred_check_branch
        %230 = sbr.rel (%p228) target = $region40
      $region39: #{tpu_custom_call.1} parent=5 // pred_region
        // Predicated region
        $region41: #{tpu_custom_call.1} parent=39 // pred_check
          %p231 = pneg %p36
        $region42: #{tpu_custom_call.1} parent=39 // pred_check_branch
          %233 = sbr.rel (%p231) target = $region44
        $region43: #{tpu_custom_call.1} parent=39 // pred_region
          %p234 = scmp.lt.s32.totalorder %s16, 1
          %s235 = scalar_select %p234, %s16, 1
          %s236 = smul.addr %s235, 8
          %s237 = scalar_lea.vmem %s0, %s236
        $region44: #{tpu_custom_call.1} parent=39 // pred_fallthru
          _
      $region40: #{tpu_custom_call.1} parent=5 // pred_fallthru
        _
      %p238 = scmp.le.s32.totalorder 1, %s16
      %p239 = scmp.lt.s32.totalorder %s16, 3
      %p240 = pnand %p238, %p239
      %p241 = pneg %p240
      // Predicated region
      $region45: #{tpu_custom_call.1} parent=5 // pred_check
        _
      $region46: #{tpu_custom_call.1} parent=5 // pred_check_branch
        %243 = sbr.rel (%p240) target = $region48
      $region47: #{tpu_custom_call.1} parent=5 // pred_region
        %s244 = ssub.s32 %s16, 1
        %p245 = scmp.lt.s32.totalorder %s21, 1
        %s246 = scalar_select %p245, %s21, 1
        %s247 = smul.addr %s246, 8
        %s248 = scalar_lea.vmem %s0, %s247
        %p249 = pneg %p42
        %p250 = pneg %p39
        %p251 = pneg %p63
        %p252 = pneg %p60
        %p253 = pneg %p84
        %p254 = pneg %p81
        %p255 = pneg %p105
        %p256 = pneg %p102
        %p257 = pneg %p126
        %p258 = pneg %p123
        %p259 = pneg %p147
        %p260 = pneg %p144
        %p261 = pneg %p168
        %p262 = pneg %p165
        %p263 = pneg %p194
        %p264 = pneg %p191
        %s265 = sand.u32 %s181, 1
        %s266 = scalar_lea.sflag [#allocation3], %s265
        %s267 = sand.u32 %s181, 1
        %s268 = scalar_lea.vmem [#allocation2], %s267
        %p269 = scmp.lt.s32.totalorder %s21, 1
        %s270 = scalar_select %p269, %s21, 1
        %s271 = smul.addr %s270, 8
        %s272 = scalar_lea.vmem %s0, %s271
        %v274 = vld [vmem:[%s272] sm:$0xff]
        %v275 = vpack.c.bf16 %v274, %v274
        %v276 = vld [vmem:[%s1] sm:$0xf]
        %v277 = vld [vmem:[%s1 + $0x4] sm:$0xf]
        %v278 = vld [vmem:[%s1 + $0x8] sm:$0xf]
        %v279 = vld [vmem:[%s1 + $0xc] sm:$0xf]
        %v280 = vld [vmem:[%s2] sm:$0x1]
        %v282 = vlaneseq
        %v283 = vshrl.u32 %v282, 7
        %v284 = vsub.s32 0, %v283
        %v285 = vrot.slane %v280, %v284
        %v291 = vunpack.c.l.b16 %v276
        %v292 = vunpack.c.l.b16 %v277
        %v293 = vunpack.c.l.b16 %v278
        %v294 = vunpack.c.l.b16 %v279
        %v295 = vpack.c.b16 %v292, %v291
        %v296 = vpack.c.b16 %v294, %v293
        %vm299 = vcmask 261120
        %v301 = vsel %vm299, %v275, 0
        %303 = vmatprep.subr.bf16.mxu0 0
        %304 = vmatpush1.bf16.msra.mxu0 %v295
        %305 = vmatprep.subr.bf16.mxu0 0
        %306 = vmatpush1.bf16.msra.mxu0 %v296
        %307 = vmatprep.subr.bf16.mxu0 0
        %308 = vmatpush1.bf16.msra.mxu0 0
        %309 = vmatprep.subr.bf16.mxu0 0
        %310 = vmatpush1.bf16.msra.mxu0 0
        %311 = vmatprep.subr.bf16.mxu0 0
        %312 = vmatpush1.bf16.msra.mxu0 0
        %313 = vmatprep.subr.bf16.mxu0 0
        %314 = vmatpush1.bf16.msra.mxu0 0
        %315 = vmatprep.subr.bf16.mxu0 0
        %316 = vmatpush1.bf16.msra.mxu0 0
        %317 = vmatprep.subr.bf16.mxu0 0
        %318 = vmatpush1.bf16.msra.mxu0 0
        %319 = vmatprep.subr.bf16.mxu0 0
        %320 = vmatpush1.bf16.msra.mxu0 0
        %321 = vmatprep.subr.bf16.mxu0 0
        %322 = vmatpush1.bf16.msra.mxu0 0
        %323 = vmatprep.subr.bf16.mxu0 0
        %324 = vmatpush1.bf16.msra.mxu0 0
        %325 = vmatprep.subr.bf16.mxu0 0
        %326 = vmatpush1.bf16.msra.mxu0 0
        %327 = vmatprep.subr.bf16.mxu0 0
        %328 = vmatpush1.bf16.msra.mxu0 0
        %329 = vmatprep.subr.bf16.mxu0 0
        %330 = vmatpush1.bf16.msra.mxu0 0
        %331 = vmatprep.subr.bf16.mxu0 0
        %332 = vmatpush1.bf16.msra.mxu0 0
        %333 = vmatprep.subr.bf16.mxu0 0
        %334 = vmatpush1.bf16.msra.mxu0 0
        %335 = vmatprep.mubr.bf16.mxu0 0
        %336 = vmatmul.mubr.bf16.gmra.mrb[0].mxu0 %v301
        %v337 = vpop.f32.mrb[0].mxu0
        %v338 = vadd.f32 %v285, %v337
        %v339 = vpop.f32.mrb[0].mxu0
        %v340 = vpop.f32.mrb[0].mxu0
        %v341 = vpop.f32.mrb[0].mxu0
        %342 = vdwg.mxu0
        %v343 = vmul.f32 %v338, 0.5
        %v344 = vmul.f32 %v338, 0.70710677
        %vm345 = vcmp.ge.f32.partialorder %v344, 0.0
        %v346 = vsel %vm345, 1.0, -1.0
        %v347 = vand.u32 2147483647, %v344
        %v348 = vmul.f32 %v347, 0.3275911
        %v349 = vadd.f32 %v348, 1.0
        %v350 = vrcp.pop %v349
        %v351 = vmul.f32 %v350, 1.0614054
        %v352 = vadd.f32 %v351, -1.4531521
        %v353 = vmul.f32 %v352, %v350
        %v354 = vadd.f32 %v353, 1.4214138
        %v355 = vmul.f32 %v354, %v350
        %v356 = vadd.f32 %v355, -0.28449672
        %v357 = vmul.f32 %v356, %v350
        %v358 = vadd.f32 %v357, 0.2548296
        %v359 = vmul.f32 %v358, %v350
        %v360 = vsub.f32 0.0, %v347
        %v361 = vmul.f32 %v360, %v347
        %v362 = vmul.f32 %v361, 1.442695
        %v363 = vpow.pop %v362
        %v364 = vmul.f32 %v359, %v363
        %v365 = vsub.f32 1.0, %v364
        %v366 = vmul.f32 %v346, %v365
        %v367 = vadd.f32 %v366, 1.0
        %v368 = vmul.f32 %v343, %v367
        %v369 = vlaneseq
        %v370 = vshrl.u32 %v369, 7
        %vm371 = vcmp.lt.s32.totalorder %v370, 0
        %v372 = vsub.s32 0, %v370
        %v373 = vsel %vm371, %v372, %v370
        %v374 = vshrl.u32 %v373, 3
        %v375 = vand.u32 %v373, 7
        %v376 = vsub.s32 0, %v375
        %v377 = vsel %vm371, %v376, %v375
        %vm378 = vcmp.ne.s32.totalorder %v377, 0
        %vm379 = vcmp.lt.s32.totalorder %v377, 0
        %vm380 = vmand %vm379, %vm378
        %v381 = vadd.s32 %v377, 8
        %v382 = vsel %vm380, %v381, %v377
        %v383 = vrot.slane %v368, 6
        %v384 = vadd.s32 %v382, 4294967294
        %vm385 = vcmp.ge.s32.totalorder %v384, 0
        %vm386 = vcmp.lt.s32.totalorder %v384, 8
        %vm387 = vmand %vm385, %vm386
        %v388 = vsel %vm387, 1, 0
        %vm389 = vcmp.eq.s32.totalorder %v388, 1
        %v390 = vsel %vm389, %v383, 0.0
        %v391 = vpack.c.bf16 %v390, %v390
        %v392 = vld [vmem:[%s3] sm:$0xf]
        %v393 = vld [vmem:[%s3 + $0x4] sm:$0xf]
        %v394 = vld [vmem:[%s3 + $0x8] sm:$0xf]
        %v395 = vld [vmem:[%s3 + $0xc] sm:$0xf]
        %v396 = vrot.slane %v368, 7
        %v397 = vadd.s32 %v382, 4294967295
        %vm398 = vcmp.ge.s32.totalorder %v397, 0
        %vm399 = vcmp.lt.s32.totalorder %v397, 8
        %vm400 = vmand %vm398, %vm399
        %v401 = vsel %vm400, 1, 0
        %vm402 = vcmp.eq.s32.totalorder %v401, 1
        %v403 = vsel %vm402, %v396, 0.0
        %v404 = vpack.c.bf16 %v403, %v403
        %s405 = scalar_lea.vmem %s3, 16
        %v406 = vld [vmem:[%s405] sm:$0xf]
        %v407 = vld [vmem:[%s405 + $0x4] sm:$0xf]
        %v408 = vld [vmem:[%s405 + $0x8] sm:$0xf]
        %v409 = vld [vmem:[%s405 + $0xc] sm:$0xf]
        %v414 = vunpack.c.l.b16 %v406
        %v415 = vunpack.c.l.b16 %v407
        %v416 = vunpack.c.l.b16 %v408
        %v417 = vunpack.c.l.b16 %v409
        %v418 = vpack.c.b16 %v415, %v414
        %v419 = vpack.c.b16 %v417, %v416
        %v423 = vsel %vm299, %v404, 0
        %425 = vmatprep.subr.bf16.mxu0 0
        %426 = vmatpush1.bf16.msra.mxu0 %v418
        %427 = vmatprep.subr.bf16.mxu0 0
        %428 = vmatpush1.bf16.msra.mxu0 %v419
        %429 = vmatprep.subr.bf16.mxu0 0
        %430 = vmatpush1.bf16.msra.mxu0 0
        %431 = vmatprep.subr.bf16.mxu0 0
        %432 = vmatpush1.bf16.msra.mxu0 0
        %433 = vmatprep.subr.bf16.mxu0 0
        %434 = vmatpush1.bf16.msra.mxu0 0
        %435 = vmatprep.subr.bf16.mxu0 0
        %436 = vmatpush1.bf16.msra.mxu0 0
        %437 = vmatprep.subr.bf16.mxu0 0
        %438 = vmatpush1.bf16.msra.mxu0 0
        %439 = vmatprep.subr.bf16.mxu0 0
        %440 = vmatpush1.bf16.msra.mxu0 0
        %441 = vmatprep.subr.bf16.mxu0 0
        %442 = vmatpush1.bf16.msra.mxu0 0
        %443 = vmatprep.subr.bf16.mxu0 0
        %444 = vmatpush1.bf16.msra.mxu0 0
        %445 = vmatprep.subr.bf16.mxu0 0
        %446 = vmatpush1.bf16.msra.mxu0 0
        %447 = vmatprep.subr.bf16.mxu0 0
        %448 = vmatpush1.bf16.msra.mxu0 0
        %449 = vmatprep.subr.bf16.mxu0 0
        %450 = vmatpush1.bf16.msra.mxu0 0
        %451 = vmatprep.subr.bf16.mxu0 0
        %452 = vmatpush1.bf16.msra.mxu0 0
        %453 = vmatprep.subr.bf16.mxu0 0
        %454 = vmatpush1.bf16.msra.mxu0 0
        %455 = vmatprep.subr.bf16.mxu0 0
        %456 = vmatpush1.bf16.msra.mxu0 0
        %457 = vmatprep.mubr.bf16.mxu0 0
        %458 = vmatmul.mubr.bf16.gmra.mrb[0].mxu0 %v423
        %v459 = vpop.f32.mrb[0].mxu0
        %v460 = vadd.f32 0.0, %v459
        %v461 = vpop.f32.mrb[0].mxu0
        %v462 = vpop.f32.mrb[0].mxu0
        %v463 = vpop.f32.mrb[0].mxu0
        %464 = vdwg.mxu0
        %v469 = vunpack.c.l.b16 %v392
        %v470 = vunpack.c.l.b16 %v393
        %v471 = vunpack.c.l.b16 %v394
        %v472 = vunpack.c.l.b16 %v395
        %v473 = vpack.c.b16 %v470, %v469
        %v474 = vpack.c.b16 %v472, %v471
        %v478 = vsel %vm299, %v391, 0
        %480 = vmatprep.subr.bf16.mxu0 0
        %481 = vmatpush1.bf16.msra.mxu0 %v473
        %482 = vmatprep.subr.bf16.mxu0 0
        %483 = vmatpush1.bf16.msra.mxu0 %v474
        %484 = vmatprep.subr.bf16.mxu0 0
        %485 = vmatpush1.bf16.msra.mxu0 0
        %486 = vmatprep.subr.bf16.mxu0 0
        %487 = vmatpush1.bf16.msra.mxu0 0
        %488 = vmatprep.subr.bf16.mxu0 0
        %489 = vmatpush1.bf16.msra.mxu0 0
        %490 = vmatprep.subr.bf16.mxu0 0
        %491 = vmatpush1.bf16.msra.mxu0 0
        %492 = vmatprep.subr.bf16.mxu0 0
        %493 = vmatpush1.bf16.msra.mxu0 0
        %494 = vmatprep.subr.bf16.mxu0 0
        %495 = vmatpush1.bf16.msra.mxu0 0
        %496 = vmatprep.subr.bf16.mxu0 0
        %497 = vmatpush1.bf16.msra.mxu0 0
        %498 = vmatprep.subr.bf16.mxu0 0
        %499 = vmatpush1.bf16.msra.mxu0 0
        %500 = vmatprep.subr.bf16.mxu0 0
        %501 = vmatpush1.bf16.msra.mxu0 0
        %502 = vmatprep.subr.bf16.mxu0 0
        %503 = vmatpush1.bf16.msra.mxu0 0
        %504 = vmatprep.subr.bf16.mxu0 0
        %505 = vmatpush1.bf16.msra.mxu0 0
        %506 = vmatprep.subr.bf16.mxu0 0
        %507 = vmatpush1.bf16.msra.mxu0 0
        %508 = vmatprep.subr.bf16.mxu0 0
        %509 = vmatpush1.bf16.msra.mxu0 0
        %510 = vmatprep.subr.bf16.mxu0 0
        %511 = vmatpush1.bf16.msra.mxu0 0
        %512 = vmatprep.mubr.bf16.mxu0 0
        %513 = vmatmul.mubr.bf16.gmra.mrb[0].mxu0 %v478
        %v514 = vpop.f32.mrb[0].mxu0
        %v515 = vadd.f32 %v460, %v514
        %v516 = vpop.f32.mrb[0].mxu0
        %v517 = vpop.f32.mrb[0].mxu0
        %v518 = vpop.f32.mrb[0].mxu0
        %519 = vdwg.mxu0
        %v520 = vpack.c.bf16 %v368, %v368
        %s521 = scalar_lea.vmem %s3, 32
        %v522 = vld [vmem:[%s521] sm:$0xf]
        %v523 = vld [vmem:[%s521 + $0x4] sm:$0xf]
        %v524 = vld [vmem:[%s521 + $0x8] sm:$0xf]
        %v525 = vld [vmem:[%s521 + $0xc] sm:$0xf]
        %v530 = vunpack.c.l.b16 %v522
        %v531 = vunpack.c.l.b16 %v523
        %v532 = vunpack.c.l.b16 %v524
        %v533 = vunpack.c.l.b16 %v525
        %v534 = vpack.c.b16 %v531, %v530
        %v535 = vpack.c.b16 %v533, %v532
        %v539 = vsel %vm299, %v520, 0
        %541 = vmatprep.subr.bf16.mxu0 0
        %542 = vmatpush1.bf16.msra.mxu0 %v534
        %543 = vmatprep.subr.bf16.mxu0 0
        %544 = vmatpush1.bf16.msra.mxu0 %v535
        %545 = vmatprep.subr.bf16.mxu0 0
        %546 = vmatpush1.bf16.msra.mxu0 0
        %547 = vmatprep.subr.bf16.mxu0 0
        %548 = vmatpush1.bf16.msra.mxu0 0
        %549 = vmatprep.subr.bf16.mxu0 0
        %550 = vmatpush1.bf16.msra.mxu0 0
        %551 = vmatprep.subr.bf16.mxu0 0
        %552 = vmatpush1.bf16.msra.mxu0 0
        %553 = vmatprep.subr.bf16.mxu0 0
        %554 = vmatpush1.bf16.msra.mxu0 0
        %555 = vmatprep.subr.bf16.mxu0 0
        %556 = vmatpush1.bf16.msra.mxu0 0
        %557 = vmatprep.subr.bf16.mxu0 0
        %558 = vmatpush1.bf16.msra.mxu0 0
        %559 = vmatprep.subr.bf16.mxu0 0
        %560 = vmatpush1.bf16.msra.mxu0 0
        %561 = vmatprep.subr.bf16.mxu0 0
        %562 = vmatpush1.bf16.msra.mxu0 0
        %563 = vmatprep.subr.bf16.mxu0 0
        %564 = vmatpush1.bf16.msra.mxu0 0
        %565 = vmatprep.subr.bf16.mxu0 0
        %566 = vmatpush1.bf16.msra.mxu0 0
        %567 = vmatprep.subr.bf16.mxu0 0
        %568 = vmatpush1.bf16.msra.mxu0 0
        %569 = vmatprep.subr.bf16.mxu0 0
        %570 = vmatpush1.bf16.msra.mxu0 0
        %571 = vmatprep.subr.bf16.mxu0 0
        %572 = vmatpush1.bf16.msra.mxu0 0
        %573 = vmatprep.mubr.bf16.mxu0 0
        %574 = vmatmul.mubr.bf16.gmra.mrb[0].mxu0 %v539
        %v575 = vpop.f32.mrb[0].mxu0
        %v576 = vadd.f32 0.0, %v575
        %v577 = vpop.f32.mrb[0].mxu0
        %v578 = vpop.f32.mrb[0].mxu0
        %v579 = vpop.f32.mrb[0].mxu0
        %580 = vdwg.mxu0
        %v581 = vadd.f32 %v515, %v576
        %v582 = vrot.slane %v368, 1
        %v583 = vadd.s32 %v382, 1
        %vm584 = vcmp.ge.s32.totalorder %v583, 0
        %vm585 = vcmp.lt.s32.totalorder %v583, 8
        %vm586 = vmand %vm584, %vm585
        %v587 = vsel %vm586, 1, 0
        %vm588 = vcmp.eq.s32.totalorder %v587, 1
        %v589 = vsel %vm588, %v582, 0.0
        %v590 = vpack.c.bf16 %v589, %v589
        %s591 = scalar_lea.vmem %s3, 48
        %v592 = vld [vmem:[%s591] sm:$0xf]
        %v593 = vld [vmem:[%s591 + $0x4] sm:$0xf]
        %v594 = vld [vmem:[%s591 + $0x8] sm:$0xf]
        %v595 = vld [vmem:[%s591 + $0xc] sm:$0xf]
        %v600 = vunpack.c.l.b16 %v592
        %v601 = vunpack.c.l.b16 %v593
        %v602 = vunpack.c.l.b16 %v594
        %v603 = vunpack.c.l.b16 %v595
        %v604 = vpack.c.b16 %v601, %v600
        %v605 = vpack.c.b16 %v603, %v602
        %v609 = vsel %vm299, %v590, 0
        %611 = vmatprep.subr.bf16.mxu0 0
        %612 = vmatpush1.bf16.msra.mxu0 %v604
        %613 = vmatprep.subr.bf16.mxu0 0
        %614 = vmatpush1.bf16.msra.mxu0 %v605
        %615 = vmatprep.subr.bf16.mxu0 0
        %616 = vmatpush1.bf16.msra.mxu0 0
        %617 = vmatprep.subr.bf16.mxu0 0
        %618 = vmatpush1.bf16.msra.mxu0 0
        %619 = vmatprep.subr.bf16.mxu0 0
        %620 = vmatpush1.bf16.msra.mxu0 0
        %621 = vmatprep.subr.bf16.mxu0 0
        %622 = vmatpush1.bf16.msra.mxu0 0
        %623 = vmatprep.subr.bf16.mxu0 0
        %624 = vmatpush1.bf16.msra.mxu0 0
        %625 = vmatprep.subr.bf16.mxu0 0
        %626 = vmatpush1.bf16.msra.mxu0 0
        %627 = vmatprep.subr.bf16.mxu0 0
        %628 = vmatpush1.bf16.msra.mxu0 0
        %629 = vmatprep.subr.bf16.mxu0 0
        %630 = vmatpush1.bf16.msra.mxu0 0
        %631 = vmatprep.subr.bf16.mxu0 0
        %632 = vmatpush1.bf16.msra.mxu0 0
        %633 = vmatprep.subr.bf16.mxu0 0
        %634 = vmatpush1.bf16.msra.mxu0 0
        %635 = vmatprep.subr.bf16.mxu0 0
        %636 = vmatpush1.bf16.msra.mxu0 0
        %637 = vmatprep.subr.bf16.mxu0 0
        %638 = vmatpush1.bf16.msra.mxu0 0
        %639 = vmatprep.subr.bf16.mxu0 0
        %640 = vmatpush1.bf16.msra.mxu0 0
        %641 = vmatprep.subr.bf16.mxu0 0
        %642 = vmatpush1.bf16.msra.mxu0 0
        %643 = vmatprep.mubr.bf16.mxu0 0
        %644 = vmatmul.mubr.bf16.gmra.mrb[0].mxu0 %v609
        %v645 = vpop.f32.mrb[0].mxu0
        %v646 = vadd.f32 0.0, %v645
        %v647 = vpop.f32.mrb[0].mxu0
        %v648 = vpop.f32.mrb[0].mxu0
        %v649 = vpop.f32.mrb[0].mxu0
        %650 = vdwg.mxu0
        %v651 = vadd.f32 %v581, %v646
        %v652 = vrot.slane %v368, 2
        %v653 = vadd.s32 %v382, 2
        %vm654 = vcmp.ge.s32.totalorder %v653, 0
        %vm655 = vcmp.lt.s32.totalorder %v653, 8
        %vm656 = vmand %vm654, %vm655
        %v657 = vsel %vm656, 1, 0
        %vm658 = vcmp.eq.s32.totalorder %v657, 1
        %v659 = vsel %vm658, %v652, 0.0
        %v660 = vpack.c.bf16 %v659, %v659
        %s661 = scalar_lea.vmem %s3, 64
        %v662 = vld [vmem:[%s661] sm:$0xf]
        %v663 = vld [vmem:[%s661 + $0x4] sm:$0xf]
        %v664 = vld [vmem:[%s661 + $0x8] sm:$0xf]
        %v665 = vld [vmem:[%s661 + $0xc] sm:$0xf]
        %v670 = vunpack.c.l.b16 %v662
        %v671 = vunpack.c.l.b16 %v663
        %v672 = vunpack.c.l.b16 %v664
        %v673 = vunpack.c.l.b16 %v665
        %v674 = vpack.c.b16 %v671, %v670
        %v675 = vpack.c.b16 %v673, %v672
        %v679 = vsel %vm299, %v660, 0
        %681 = vmatprep.subr.bf16.mxu0 0
        %682 = vmatpush1.bf16.msra.mxu0 %v674
        %683 = vmatprep.subr.bf16.mxu0 0
        %684 = vmatpush1.bf16.msra.mxu0 %v675
        %685 = vmatprep.subr.bf16.mxu0 0
        %686 = vmatpush1.bf16.msra.mxu0 0
        %687 = vmatprep.subr.bf16.mxu0 0
        %688 = vmatpush1.bf16.msra.mxu0 0
        %689 = vmatprep.subr.bf16.mxu0 0
        %690 = vmatpush1.bf16.msra.mxu0 0
        %691 = vmatprep.subr.bf16.mxu0 0
        %692 = vmatpush1.bf16.msra.mxu0 0
        %693 = vmatprep.subr.bf16.mxu0 0
        %694 = vmatpush1.bf16.msra.mxu0 0
        %695 = vmatprep.subr.bf16.mxu0 0
        %696 = vmatpush1.bf16.msra.mxu0 0
        %697 = vmatprep.subr.bf16.mxu0 0
        %698 = vmatpush1.bf16.msra.mxu0 0
        %699 = vmatprep.subr.bf16.mxu0 0
        %700 = vmatpush1.bf16.msra.mxu0 0
        %701 = vmatprep.subr.bf16.mxu0 0
        %702 = vmatpush1.bf16.msra.mxu0 0
        %703 = vmatprep.subr.bf16.mxu0 0
        %704 = vmatpush1.bf16.msra.mxu0 0
        %705 = vmatprep.subr.bf16.mxu0 0
        %706 = vmatpush1.bf16.msra.mxu0 0
        %707 = vmatprep.subr.bf16.mxu0 0
        %708 = vmatpush1.bf16.msra.mxu0 0
        %709 = vmatprep.subr.bf16.mxu0 0
        %710 = vmatpush1.bf16.msra.mxu0 0
        %711 = vmatprep.subr.bf16.mxu0 0
        %712 = vmatpush1.bf16.msra.mxu0 0
        %713 = vmatprep.mubr.bf16.mxu0 0
        %714 = vmatmul.mubr.bf16.gmra.mrb[0].mxu0 %v679
        %v715 = vpop.f32.mrb[0].mxu0
        %v716 = vadd.f32 0.0, %v715
        %v717 = vpop.f32.mrb[0].mxu0
        %v718 = vpop.f32.mrb[0].mxu0
        %v719 = vpop.f32.mrb[0].mxu0
        %720 = vdwg.mxu0
        %v721 = vadd.f32 %v651, %v716
        %v722 = vld [vmem:[%s4] sm:$0x1]
        %v724 = vlaneseq
        %v725 = vshrl.u32 %v724, 7
        %v726 = vsub.s32 0, %v725
        %v727 = vrot.slane %v722, %v726
        %v729 = vadd.f32 %v721, %v727
        %v730 = vmax.f32 %v729, 0.0
        %vm731 = vcmask 195584
        %v732 = vsel %vm731, %v730, 0.0
        %v733 = vrot.slane %v732, 4
        %v734 = vadd.f32 %v732, %v733
        %v735 = vrot.slane %v734, 2
        %v736 = vadd.f32 %v734, %v735
        %v737 = vrot.slane %v736, 1
        %v738 = vadd.f32 %v736, %v737
        %v739 = vld [vmem:[%s5] sm:$0xff]
        %v740 = vld [vmem:[%s5 + $0x8] sm:$0xff]
        %v741 = vld [vmem:[%s5 + $0x10] sm:$0xff]
        %v742 = vld [vmem:[%s6] sm:$0x1]
        %v744 = vsel %vm731, %v738, 0
        %746 = vmatprep.subr.mxu0 0.0
        %747 = vmatpush1.msra.mxu0 %v739
        %748 = vmatprep.subr.mxu0 0.0
        %749 = vmatpush1.msra.mxu0 %v740
        %750 = vmatprep.subr.mxu0 0.0
        %751 = vmatpush1.msra.mxu0 %v741
        %752 = vmatprep.subr.mxu0 0.0
        %753 = vmatpush1.msra.mxu0 0.0
        %754 = vmatprep.subr.mxu0 0.0
        %755 = vmatpush1.msra.mxu0 0.0
        %756 = vmatprep.subr.mxu0 0.0
        %757 = vmatpush1.msra.mxu0 0.0
        %758 = vmatprep.subr.mxu0 0.0
        %759 = vmatpush1.msra.mxu0 0.0
        %760 = vmatprep.subr.mxu0 0.0
        %761 = vmatpush1.msra.mxu0 0.0
        %762 = vmatprep.subr.mxu0 0.0
        %763 = vmatpush1.msra.mxu0 0.0
        %764 = vmatprep.subr.mxu0 0.0
        %765 = vmatpush1.msra.mxu0 0.0
        %766 = vmatprep.subr.mxu0 0.0
        %767 = vmatpush1.msra.mxu0 0.0
        %768 = vmatprep.subr.mxu0 0.0
        %769 = vmatpush1.msra.mxu0 0.0
        %770 = vmatprep.subr.mxu0 0.0
        %771 = vmatpush1.msra.mxu0 0.0
        %772 = vmatprep.subr.mxu0 0.0
        %773 = vmatpush1.msra.mxu0 0.0
        %774 = vmatprep.subr.mxu0 0.0
        %775 = vmatpush1.msra.mxu0 0.0
        %776 = vmatprep.subr.mxu0 0.0
        %777 = vmatpush1.msra.mxu0 0.0
        %778 = vmatprep.subr.mxu0 0.0
        %779 = vmatpush1.msra.mxu0 0.0
        %780 = vmatprep.subr.mxu0 0.0
        %781 = vmatpush1.msra.mxu0 0.0
        %782 = vmatprep.subr.mxu0 0.0
        %783 = vmatpush1.msra.mxu0 0.0
        %784 = vmatprep.subr.mxu0 0.0
        %785 = vmatpush1.msra.mxu0 0.0
        %786 = vmatprep.subr.mxu0 0.0
        %787 = vmatpush1.msra.mxu0 0.0
        %788 = vmatprep.subr.mxu0 0.0
        %789 = vmatpush1.msra.mxu0 0.0
        %790 = vmatprep.subr.mxu0 0.0
        %791 = vmatpush1.msra.mxu0 0.0
        %792 = vmatprep.subr.mxu0 0.0
        %793 = vmatpush1.msra.mxu0 0.0
        %794 = vmatprep.subr.mxu0 0.0
        %795 = vmatpush1.msra.mxu0 0.0
        %796 = vmatprep.subr.mxu0 0.0
        %797 = vmatpush1.msra.mxu0 0.0
        %798 = vmatprep.subr.mxu0 0.0
        %799 = vmatpush1.msra.mxu0 0.0
        %800 = vmatprep.subr.mxu0 0.0
        %801 = vmatpush1.msra.mxu0 0.0
        %802 = vmatprep.subr.mxu0 0.0
        %803 = vmatpush1.msra.mxu0 0.0
        %804 = vmatprep.subr.mxu0 0.0
        %805 = vmatpush1.msra.mxu0 0.0
        %806 = vmatprep.subr.mxu0 0.0
        %807 = vmatpush1.msra.mxu0 0.0
        %808 = vmatprep.subr.mxu0 0.0
        %809 = vmatpush1.msra.mxu0 0.0
        %810 = vmatprep.mubr.f32.mxu0 0.0
        %811 = vmatmul.mubr.f32.gmra.mrb[0].mxu0 %v744
        %v812 = vpop.f32.mrb[0].mxu0
        %v813 = vadd.f32 %v742, %v812
        %v814 = vpop.f32.mrb[0].mxu0
        %815 = vdwg.mxu0
        %vm816 = vcmask 24576
        %v817 = vsel %vm816, %v813, -inf
        %818 = vmax.xlane.f32.xlu0 %v817
        %v819 = vpop.xlane.xlu0 %818
        %v820 = vsub.f32 %v813, %v819
        %v821 = vmul.f32 %v820, 1.442695
        %v822 = vpow.pop %v821
        %v823 = vsel %vm816, %v822, 0.0
        %824 = vadd.xlane.f32.xlu0 %v823
        %v825 = vpop.xlane.xlu0 %824
        %v826 = vlog2.pop %v825
        %v827 = vmul.f32 %v826, 0.6931472
        %v828 = vadd.f32 %v827, %v819
        %v829 = vsub.f32 %v813, %v828
        %830 = vst.msk [vmem:[%s268] sm:$0x1] %vm816, %v829
        %s831 = sand.u32 %s181, 1
        %s832 = scalar_lea.sflag [#allocation3], %s831
        %s833 = sand.u32 %s181, 1
        %s834 = scalar_lea.vmem [#allocation2], %s833
        // Predicated region
        $region49: #{tpu_custom_call.1} parent=47 // pred_check
          %p835 = pneg %p191
        $region50: #{tpu_custom_call.1} parent=47 // pred_check_branch
          %837 = sbr.rel (%p835) target = $region52
        $region51: #{tpu_custom_call.1} parent=47 // pred_region
          %s839 = ssub.s32 16, 16
          %840 = vsyncadd %s832, %s839
          %s841 = smul.addr %s21, 16
          %s842 = scalar_lea.hbm %s7, %s841
          %s844 = sshll.u32 %s834, 4
          %s845 = int_to_ptr.vmem [resolvable:$true] %s844
          %847 = dma.vmem_to_hbm [thread:$0]  %s845, 16, %s842, %s832
        $region52: #{tpu_custom_call.1} parent=47 // pred_fallthru
          _
      $region48: #{tpu_custom_call.1} parent=5 // pred_fallthru
        _
      %p848 = scmp.le.s32.totalorder 2, %s16
      // Predicated region
      $region53: #{tpu_custom_call.1} parent=5 // pred_check
        %p849 = pneg %p848
      $region54: #{tpu_custom_call.1} parent=5 // pred_check_branch
        %851 = sbr.rel (%p849) target = $region56
      $region55: #{tpu_custom_call.1} parent=5 // pred_region
        %s852 = ssub.s32 %s16, 2
        // Predicated region
        $region57: #{tpu_custom_call.1} parent=55 // pred_check
          %p853 = pneg %p197
        $region58: #{tpu_custom_call.1} parent=55 // pred_check_branch
          %855 = sbr.rel (%p853) target = $region60
        $region59: #{tpu_custom_call.1} parent=55 // pred_region
          %s856 = sand.u32 %s182, 1
          %s857 = scalar_lea.sflag [#allocation3], %s856
          %s858 = sand.u32 %s182, 1
          %s859 = scalar_lea.vmem [#allocation2], %s858
          %860 = dma.done %s857, 16
        $region60: #{tpu_custom_call.1} parent=55 // pred_fallthru
          _
      $region56: #{tpu_custom_call.1} parent=5 // pred_fallthru
        _
    $region6: #{tpu_custom_call.1} parent=1 // loop_footer
      %s20 = sadd.s32 1, %s16
    $region7: #{tpu_custom_call.1} parent=1 // loop_footer_branch
      %15 = sbr.rel target = $region3
    $region8: #{tpu_custom_call.1} parent=1 // loop_exit
      _
    %861 = vsyncpa [#allocation3], 1
    %s862 = scalar_lea.sflag [#allocation3], 1
    %863 = vsyncpa %s862, 1

</llo_original>
